<compile_context>
chip_gen: v7x
topology: tpu7x:2x2x1
jax: 0.10.0
libtpu: 0.0.40
codegen_flags: <defaults>
</compile_context>

<pallas_src>
import functools

import jax
import jax.numpy as jnp
from jax import lax
from jax.experimental import pallas as pl
from jax.experimental.pallas import tpu as pltpu


# ------------------------------- kernel ------------------------------------ #

def _fused_kernel(x_ref, wd_ref, bd_ref, wp_ref, bp_ref, out_ref, xpad_ref,
                  *, H, W, C, Cout, K, hblk):
    """Fused depthwise(KxK) + pointwise(1x1) conv for one (batch, row-tile).

    x_ref   : (1, H, W, C)        VMEM  unpadded NHWC image (resident across row tiles)
    wd_ref  : (K*K, C)            VMEM  depthwise taps, one lane-vector per tap
    bd_ref  : (1, C)              VMEM  depthwise bias (lane-dense)
    wp_ref  : (C, Cout)           VMEM  pointwise weight
    bp_ref  : (1, Cout)           VMEM  pointwise bias (lane-dense)
    out_ref : (1, hblk, W, Cout)  VMEM  output row tile
    xpad_ref: (H+2p, W+2p, C)     VMEM  scratch: zero-padded copy of the image
    """
    t = pl.program_id(1)
    p = K // 2

    # Build the zero-padded image once per batch element (t == 0) and reuse it for
    # every row tile of that batch element (row-tile axis is "arbitrary"/sequential).
    @pl.when(t == 0)
    def _():
        xpad_ref[...] = jnp.zeros_like(xpad_ref)
        xpad_ref[p:p + H, p:p + W, :] = x_ref[0]

    r0 = t * hblk  # first output row of this tile == first padded row of the window

    # ---- depthwise: K*K shifted-window MACs, channels on the lane dim -------
    wd = wd_ref[...]                                   # (K*K, C)
    acc = jnp.zeros((hblk, W, C), jnp.float32)
    for kh in range(K):                                # static unrolled taps
        for kw in range(K):
            win = xpad_ref[pl.ds(r0 + kh, hblk), kw:kw + W, :]     # (hblk, W, C)
            acc = acc + win * wd[kh * K + kw]          # per-lane weight broadcast
    acc = acc + bd_ref[0]

    # ---- pointwise 1x1: channel-mixing matmul on the MXU --------------------
    # TODO(synk): cast matmul operands to bf16 (keep f32 accumulation) on v6e/v7x
    # for MXU peak / halved DMA bytes; kept f32 here for bit-accurate checking.
    y = acc.reshape(hblk * W, C)                       # W multiple of 8 -> free relayout
    z = jnp.dot(y, wp_ref[...], preferred_element_type=jnp.float32)   # (hblk*W, Cout)
    z = z + bp_ref[...]
    out_ref[0] = z.reshape(hblk, W, Cout).astype(out_ref.dtype)


# ------------------------------- wrapper ----------------------------------- #

def separable_conv2d(x, wd, bd, wp, bp, *, kernel_size=3, stride=1, hblk=None):
    """Pallas implementation of SeparableConv2d.forward (stride=1, 'same' pad).

    x : (B, Cin, H, W) float32
    wd: (Cin, 1, K, K), bd: (Cin,)      -- depthwise conv params
    wp: (Cout, Cin, 1, 1), bp: (Cout,)  -- pointwise conv params
    returns (B, Cout, H, W) float32
    """
    assert stride == 1  # TODO(synk): strided depthwise conv not implemented
    B, C, H, W = x.shape
    K = kernel_size
    p = K // 2
    Cout = wp.shape[0]

    if hblk is None:
        hblk = min(H, 128)
    assert H % hblk == 0, "row-tile size must divide H"
    n_row_tiles = H // hblk

    # glue: channels-last layout (lane dim = channels) + lane-dense parameters.
    x_nhwc = jnp.transpose(x, (0, 2, 3, 1)).astype(jnp.float32)        # (B, H, W, C)
    wd_taps = wd.reshape(C, K * K).T.astype(jnp.float32)               # (K*K, C)
    bd_vec = bd.reshape(1, C).astype(jnp.float32)                      # (1, C)
    wp_mat = wp.reshape(Cout, C).T.astype(jnp.float32)                 # (C, Cout)
    bp_vec = bp.reshape(1, Cout).astype(jnp.float32)                   # (1, Cout)

    out_nhwc = pl.pallas_call(
        functools.partial(_fused_kernel, H=H, W=W, C=C, Cout=Cout, K=K, hblk=hblk),
        out_shape=jax.ShapeDtypeStruct((B, H, W, Cout), jnp.float32),
        grid=(B, n_row_tiles),
        in_specs=[
            # Whole image per batch element; block index constant in t, so the
            # HBM->VMEM DMA happens once per batch element, not once per row tile.
            pl.BlockSpec((1, H, W, C), lambda b, t: (b, 0, 0, 0)),
            pl.BlockSpec((K * K, C), lambda b, t: (0, 0)),
            pl.BlockSpec((1, C), lambda b, t: (0, 0)),
            pl.BlockSpec((C, Cout), lambda b, t: (0, 0)),
            pl.BlockSpec((1, Cout), lambda b, t: (0, 0)),
        ],
        out_specs=pl.BlockSpec((1, hblk, W, Cout), lambda b, t: (b, t, 0, 0)),
        scratch_shapes=[pltpu.VMEM((H + 2 * p, W + 2 * p, C), jnp.float32)],
        compiler_params=pltpu.CompilerParams(
            dimension_semantics=("parallel", "arbitrary"),
            vmem_limit_bytes=48 * 1024 * 1024),  # safe on v5e/v6e (128 MiB) and v7x (64 MiB)
    )(x_nhwc, wd_taps, bd_vec, wp_mat, bp_vec)

    return jnp.transpose(out_nhwc, (0, 3, 1, 2))   # back to NCHW


# ---------------------------- params & reference ---------------------------- #

def init_params(key, Cin, Cout, K):
    """Deterministic init mirroring nn.Conv2d defaults (U(-1/sqrt(fan_in), ..))."""
    k1, k2, k3, k4 = jax.random.split(key, 4)
    bnd_dw = 1.0 / float(K * K) ** 0.5        # depthwise fan_in = 1 * K * K
    wd = jax.random.uniform(k1, (Cin, 1, K, K), jnp.float32, -bnd_dw, bnd_dw)
    bd = jax.random.uniform(k2, (Cin,), jnp.float32, -bnd_dw, bnd_dw)
    bnd_pw = 1.0 / float(Cin) ** 0.5          # pointwise fan_in = Cin * 1 * 1
    wp = jax.random.uniform(k3, (Cout, Cin, 1, 1), jnp.float32, -bnd_pw, bnd_pw)
    bp = jax.random.uniform(k4, (Cout,), jnp.float32, -bnd_pw, bnd_pw)
    return wd, bd, wp, bp


def reference(x, wd, bd, wp, bp, K):
    p = K // 2
    C = x.shape[1]
    y = lax.conv_general_dilated(
        x, wd, (1, 1), ((p, p), (p, p)),
        feature_group_count=C,
        dimension_numbers=("NCHW", "OIHW", "NCHW"))
    y = y + bd[None, :, None, None]
    z = lax.conv_general_dilated(
        y, wp, (1, 1), ((0, 0), (0, 0)),
        dimension_numbers=("NCHW", "OIHW", "NCHW"))
    return z + bp[None, :, None, None]


# ----------------------------------- main ----------------------------------- #

if __name__ == "__main__":
    B, Cin, Cout, H, W, K = 2, 4, 8, 16, 16, 3

    key = jax.random.PRNGKey(0)
    kx, kp = jax.random.split(key)
    x = jax.random.normal(kx, (B, Cin, H, W), jnp.float32)
    wd, bd, wp, bp = init_params(kp, Cin, Cout, K)

    # hblk=8 -> two row tiles per batch element (exercises the cached-pad path).
    out = separable_conv2d(x, wd, bd, wp, bp, kernel_size=K, stride=1, hblk=8)
    out = jax.block_until_ready(out)

    ref = jax.block_until_ready(reference(x, wd, bd, wp, bp, K))
    assert out.shape == (B, Cout, H, W), out.shape
    max_err = float(jnp.max(jnp.abs(out - ref)))
    assert max_err < 2e-3, f"max abs error {max_err}"

    print("KERNEL_OK")
</pallas_src>

<mosaic_0001>
module attributes {stable_mosaic.version = 11 : i64} {
  func.func @_fused_kernel(%arg0: i32, %arg1: i32, %arg2: memref<1x16x16x4xf32, #tpu.memory_space<vmem>>, %arg3: memref<9x4xf32, #tpu.memory_space<vmem>>, %arg4: memref<1x4xf32, #tpu.memory_space<vmem>>, %arg5: memref<4x8xf32, #tpu.memory_space<vmem>>, %arg6: memref<1x8xf32, #tpu.memory_space<vmem>>, %arg7: memref<1x8x16x8xf32, #tpu.memory_space<vmem>>, %arg8: memref<18x18x4xf32, #tpu.memory_space<vmem>>) attributes {dimension_semantics = [#tpu.dimension_semantics<parallel>, #tpu.dimension_semantics<arbitrary>], iteration_bounds = array<i64: 2, 2>, scalar_prefetch = 0 : i64, scratch_operands = 1 : i64, tpu.core_type = #tpu.core_type<tc>, window_params = [{transform_indices = @transform_0, window_bounds = array<i64: 1, 16, 16, 4>}, {pipeline_mode = #tpu.pipeline_mode<synchronous>, transform_indices = @transform_1, window_bounds = array<i64: 9, 4>}, {pipeline_mode = #tpu.pipeline_mode<synchronous>, transform_indices = @transform_2, window_bounds = array<i64: 1, 4>}, {pipeline_mode = #tpu.pipeline_mode<synchronous>, transform_indices = @transform_3, window_bounds = array<i64: 4, 8>}, {pipeline_mode = #tpu.pipeline_mode<synchronous>, transform_indices = @transform_4, window_bounds = array<i64: 1, 8>}, {transform_indices = @transform_5, window_bounds = array<i64: 1, 8, 16, 8>}]} {
    %c0_i32 = arith.constant 0 : i32
    %0 = arith.cmpi eq, %arg1, %c0_i32 : i32
    %1 = arith.extui %0 : i1 to i32
    %c0_i32_0 = arith.constant 0 : i32
    %2 = arith.cmpi ne, %1, %c0_i32_0 : i32
    scf.if %2 {
      %cst_36 = arith.constant 0.000000e+00 : f32
      %102 = vector.broadcast %cst_36 : f32 to vector<18x18x4xf32>
      %c0_37 = arith.constant 0 : index
      %c0_38 = arith.constant 0 : index
      %c0_39 = arith.constant 0 : index
      %103 = vector.load %arg8[%c0_37, %c0_38, %c0_39] : memref<18x18x4xf32, #tpu.memory_space<vmem>>, vector<18x18x4xf32>
      tpu.vector_store %arg8[%c0_37, %c0_38, %c0_39], %102 {strides = array<i32>} : memref<18x18x4xf32, #tpu.memory_space<vmem>>, vector<18x18x4xf32>,
      %c0_40 = arith.constant 0 : index
      %c0_41 = arith.constant 0 : index
      %c0_42 = arith.constant 0 : index
      %c0_43 = arith.constant 0 : index
      %104 = vector.load %arg2[%c0_40, %c0_41, %c0_42, %c0_43] : memref<1x16x16x4xf32, #tpu.memory_space<vmem>>, vector<1x16x16x4xf32>
      %105 = vector.shape_cast %104 : vector<1x16x16x4xf32> to vector<16x16x4xf32>
      %c1_44 = arith.constant 1 : index
      %c1_45 = arith.constant 1 : index
      %c0_46 = arith.constant 0 : index
      %106 = vector.load %arg8[%c1_44, %c1_45, %c0_46] : memref<18x18x4xf32, #tpu.memory_space<vmem>>, vector<16x16x4xf32>
      tpu.vector_store %arg8[%c1_44, %c1_45, %c0_46], %105 {strides = array<i32>} : memref<18x18x4xf32, #tpu.memory_space<vmem>>, vector<16x16x4xf32>,
    } else {
    }
    %c8_i32 = arith.constant 8 : i32
    %3 = arith.muli %arg1, %c8_i32 : i32
    %c0 = arith.constant 0 : index
    %c0_1 = arith.constant 0 : index
    %4 = vector.load %arg3[%c0, %c0_1] : memref<9x4xf32, #tpu.memory_space<vmem>>, vector<9x4xf32>
    %cst = arith.constant 0.000000e+00 : f32
    %5 = vector.broadcast %cst : f32 to vector<8x16x4xf32>
    %c0_i32_2 = arith.constant 0 : i32
    %6 = arith.addi %3, %c0_i32_2 : i32
    %7 = arith.index_cast %6 : i32 to index
    %c0_3 = arith.constant 0 : index
    %c0_4 = arith.constant 0 : index
    %8 = vector.load %arg8[%7, %c0_3, %c0_4] : memref<18x18x4xf32, #tpu.memory_space<vmem>>, vector<8x16x4xf32>
    %9 = vector.extract_strided_slice %4 {offsets = [0, 0], sizes = [1, 4], strides = [1, 1]} : vector<9x4xf32> to vector<1x4xf32>
    %10 = vector.shape_cast %9 : vector<1x4xf32> to vector<4xf32>
    %11 = vector.shape_cast %10 : vector<4xf32> to vector<1x1x4xf32>
    %12 = vector.broadcast %11 : vector<1x1x4xf32> to vector<8x16x4xf32>
    %13 = arith.mulf %8, %12 : vector<8x16x4xf32>
    %14 = arith.addf %5, %13 : vector<8x16x4xf32>
    %c0_i32_5 = arith.constant 0 : i32
    %15 = arith.addi %3, %c0_i32_5 : i32
    %16 = arith.index_cast %15 : i32 to index
    %c1 = arith.constant 1 : index
    %c0_6 = arith.constant 0 : index
    %17 = vector.load %arg8[%16, %c1, %c0_6] : memref<18x18x4xf32, #tpu.memory_space<vmem>>, vector<8x16x4xf32>
    %18 = vector.extract_strided_slice %4 {offsets = [1, 0], sizes = [1, 4], strides = [1, 1]} : vector<9x4xf32> to vector<1x4xf32>
    %19 = vector.shape_cast %18 : vector<1x4xf32> to vector<4xf32>
    %20 = vector.shape_cast %19 : vector<4xf32> to vector<1x1x4xf32>
    %21 = vector.broadcast %20 : vector<1x1x4xf32> to vector<8x16x4xf32>
    %22 = arith.mulf %17, %21 : vector<8x16x4xf32>
    %23 = arith.addf %14, %22 : vector<8x16x4xf32>
    %c0_i32_7 = arith.constant 0 : i32
    %24 = arith.addi %3, %c0_i32_7 : i32
    %25 = arith.index_cast %24 : i32 to index
    %c2 = arith.constant 2 : index
    %c0_8 = arith.constant 0 : index
    %26 = vector.load %arg8[%25, %c2, %c0_8] : memref<18x18x4xf32, #tpu.memory_space<vmem>>, vector<8x16x4xf32>
    %27 = vector.extract_strided_slice %4 {offsets = [2, 0], sizes = [1, 4], strides = [1, 1]} : vector<9x4xf32> to vector<1x4xf32>
    %28 = vector.shape_cast %27 : vector<1x4xf32> to vector<4xf32>
    %29 = vector.shape_cast %28 : vector<4xf32> to vector<1x1x4xf32>
    %30 = vector.broadcast %29 : vector<1x1x4xf32> to vector<8x16x4xf32>
    %31 = arith.mulf %26, %30 : vector<8x16x4xf32>
    %32 = arith.addf %23, %31 : vector<8x16x4xf32>
    %c1_i32 = arith.constant 1 : i32
    %33 = arith.addi %3, %c1_i32 : i32
    %34 = arith.index_cast %33 : i32 to index
    %c0_9 = arith.constant 0 : index
    %c0_10 = arith.constant 0 : index
    %35 = vector.load %arg8[%34, %c0_9, %c0_10] : memref<18x18x4xf32, #tpu.memory_space<vmem>>, vector<8x16x4xf32>
    %36 = vector.extract_strided_slice %4 {offsets = [3, 0], sizes = [1, 4], strides = [1, 1]} : vector<9x4xf32> to vector<1x4xf32>
    %37 = vector.shape_cast %36 : vector<1x4xf32> to vector<4xf32>
    %38 = vector.shape_cast %37 : vector<4xf32> to vector<1x1x4xf32>
    %39 = vector.broadcast %38 : vector<1x1x4xf32> to vector<8x16x4xf32>
    %40 = arith.mulf %35, %39 : vector<8x16x4xf32>
    %41 = arith.addf %32, %40 : vector<8x16x4xf32>
    %c1_i32_11 = arith.constant 1 : i32
    %42 = arith.addi %3, %c1_i32_11 : i32
    %43 = arith.index_cast %42 : i32 to index
    %c1_12 = arith.constant 1 : index
    %c0_13 = arith.constant 0 : index
    %44 = vector.load %arg8[%43, %c1_12, %c0_13] : memref<18x18x4xf32, #tpu.memory_space<vmem>>, vector<8x16x4xf32>
    %45 = vector.extract_strided_slice %4 {offsets = [4, 0], sizes = [1, 4], strides = [1, 1]} : vector<9x4xf32> to vector<1x4xf32>
    %46 = vector.shape_cast %45 : vector<1x4xf32> to vector<4xf32>
    %47 = vector.shape_cast %46 : vector<4xf32> to vector<1x1x4xf32>
    %48 = vector.broadcast %47 : vector<1x1x4xf32> to vector<8x16x4xf32>
    %49 = arith.mulf %44, %48 : vector<8x16x4xf32>
    %50 = arith.addf %41, %49 : vector<8x16x4xf32>
    %c1_i32_14 = arith.constant 1 : i32
    %51 = arith.addi %3, %c1_i32_14 : i32
    %52 = arith.index_cast %51 : i32 to index
    %c2_15 = arith.constant 2 : index
    %c0_16 = arith.constant 0 : index
    %53 = vector.load %arg8[%52, %c2_15, %c0_16] : memref<18x18x4xf32, #tpu.memory_space<vmem>>, vector<8x16x4xf32>
    %54 = vector.extract_strided_slice %4 {offsets = [5, 0], sizes = [1, 4], strides = [1, 1]} : vector<9x4xf32> to vector<1x4xf32>
    %55 = vector.shape_cast %54 : vector<1x4xf32> to vector<4xf32>
    %56 = vector.shape_cast %55 : vector<4xf32> to vector<1x1x4xf32>
    %57 = vector.broadcast %56 : vector<1x1x4xf32> to vector<8x16x4xf32>
    %58 = arith.mulf %53, %57 : vector<8x16x4xf32>
    %59 = arith.addf %50, %58 : vector<8x16x4xf32>
    %c2_i32 = arith.constant 2 : i32
    %60 = arith.addi %3, %c2_i32 : i32
    %61 = arith.index_cast %60 : i32 to index
    %c0_17 = arith.constant 0 : index
    %c0_18 = arith.constant 0 : index
    %62 = vector.load %arg8[%61, %c0_17, %c0_18] : memref<18x18x4xf32, #tpu.memory_space<vmem>>, vector<8x16x4xf32>
    %63 = vector.extract_strided_slice %4 {offsets = [6, 0], sizes = [1, 4], strides = [1, 1]} : vector<9x4xf32> to vector<1x4xf32>
    %64 = vector.shape_cast %63 : vector<1x4xf32> to vector<4xf32>
    %65 = vector.shape_cast %64 : vector<4xf32> to vector<1x1x4xf32>
    %66 = vector.broadcast %65 : vector<1x1x4xf32> to vector<8x16x4xf32>
    %67 = arith.mulf %62, %66 : vector<8x16x4xf32>
    %68 = arith.addf %59, %67 : vector<8x16x4xf32>
    %c2_i32_19 = arith.constant 2 : i32
    %69 = arith.addi %3, %c2_i32_19 : i32
    %70 = arith.index_cast %69 : i32 to index
    %c1_20 = arith.constant 1 : index
    %c0_21 = arith.constant 0 : index
    %71 = vector.load %arg8[%70, %c1_20, %c0_21] : memref<18x18x4xf32, #tpu.memory_space<vmem>>, vector<8x16x4xf32>
    %72 = vector.extract_strided_slice %4 {offsets = [7, 0], sizes = [1, 4], strides = [1, 1]} : vector<9x4xf32> to vector<1x4xf32>
    %73 = vector.shape_cast %72 : vector<1x4xf32> to vector<4xf32>
    %74 = vector.shape_cast %73 : vector<4xf32> to vector<1x1x4xf32>
    %75 = vector.broadcast %74 : vector<1x1x4xf32> to vector<8x16x4xf32>
    %76 = arith.mulf %71, %75 : vector<8x16x4xf32>
    %77 = arith.addf %68, %76 : vector<8x16x4xf32>
    %c2_i32_22 = arith.constant 2 : i32
    %78 = arith.addi %3, %c2_i32_22 : i32
    %79 = arith.index_cast %78 : i32 to index
    %c2_23 = arith.constant 2 : index
    %c0_24 = arith.constant 0 : index
    %80 = vector.load %arg8[%79, %c2_23, %c0_24] : memref<18x18x4xf32, #tpu.memory_space<vmem>>, vector<8x16x4xf32>
    %81 = vector.extract_strided_slice %4 {offsets = [8, 0], sizes = [1, 4], strides = [1, 1]} : vector<9x4xf32> to vector<1x4xf32>
    %82 = vector.shape_cast %81 : vector<1x4xf32> to vector<4xf32>
    %83 = vector.shape_cast %82 : vector<4xf32> to vector<1x1x4xf32>
    %84 = vector.broadcast %83 : vector<1x1x4xf32> to vector<8x16x4xf32>
    %85 = arith.mulf %80, %84 : vector<8x16x4xf32>
    %86 = arith.addf %77, %85 : vector<8x16x4xf32>
    %c0_25 = arith.constant 0 : index
    %c0_26 = arith.constant 0 : index
    %87 = vector.load %arg4[%c0_25, %c0_26] : memref<1x4xf32, #tpu.memory_space<vmem>>, vector<1x4xf32>
    %88 = vector.shape_cast %87 : vector<1x4xf32> to vector<4xf32>
    %89 = vector.shape_cast %88 : vector<4xf32> to vector<1x1x4xf32>
    %90 = vector.broadcast %89 : vector<1x1x4xf32> to vector<8x16x4xf32>
    %91 = arith.addf %86, %90 : vector<8x16x4xf32>
    %92 = vector.shape_cast %91 : vector<8x16x4xf32> to vector<128x4xf32>
    %c0_27 = arith.constant 0 : index
    %c0_28 = arith.constant 0 : index
    %93 = vector.load %arg5[%c0_27, %c0_28] : memref<4x8xf32, #tpu.memory_space<vmem>>, vector<4x8xf32>
    %cst_29 = arith.constant dense<0.000000e+00> : vector<128x8xf32>
    %94 = tpu.matmul %92, %93, %cst_29 {dimension_numbers = #tpu.dot_dimension_numbers<[1], [0], [0], [1], [0, 0, 1, 1], [], []>} : vector<128x4xf32>, vector<4x8xf32>, vector<128x8xf32> -> vector<128x8xf32>
    %c0_30 = arith.constant 0 : index
    %c0_31 = arith.constant 0 : index
    %95 = vector.load %arg6[%c0_30, %c0_31] : memref<1x8xf32, #tpu.memory_space<vmem>>, vector<1x8xf32>
    %96 = vector.broadcast %95 : vector<1x8xf32> to vector<128x8xf32>
    %97 = arith.addf %94, %96 : vector<128x8xf32>
    %98 = vector.shape_cast %97 : vector<128x8xf32> to vector<8x16x8xf32>
    %c0_32 = arith.constant 0 : index
    %c0_33 = arith.constant 0 : index
    %c0_34 = arith.constant 0 : index
    %c0_35 = arith.constant 0 : index
    %99 = vector.load %arg7[%c0_32, %c0_33, %c0_34, %c0_35] : memref<1x8x16x8xf32, #tpu.memory_space<vmem>>, vector<1x8x16x8xf32>
    %100 = vector.shape_cast %99 : vector<1x8x16x8xf32> to vector<8x16x8xf32>
    %101 = vector.shape_cast %98 : vector<8x16x8xf32> to vector<1x8x16x8xf32>
    tpu.vector_store %arg7[%c0_32, %c0_33, %c0_34, %c0_35], %101 {strides = array<i32>} : memref<1x8x16x8xf32, #tpu.memory_space<vmem>>, vector<1x8x16x8xf32>,
    return
  }
  func.func @transform_0(%arg0: i32, %arg1: i32) -> (i32, i32, i32, i32) {
    %c0_i32 = arith.constant 0 : i32
    %c0_i32_0 = arith.constant 0 : i32
    %c0_i32_1 = arith.constant 0 : i32
    %c0_i32_2 = arith.constant 0 : i32
    return %arg0, %c0_i32, %c0_i32_0, %c0_i32_1 : i32, i32, i32, i32
  }
  func.func @transform_1(%arg0: i32, %arg1: i32) -> (i32, i32) {
    %c0_i32 = arith.constant 0 : i32
    %c0_i32_0 = arith.constant 0 : i32
    %c0_i32_1 = arith.constant 0 : i32
    return %c0_i32, %c0_i32_0 : i32, i32
  }
  func.func @transform_2(%arg0: i32, %arg1: i32) -> (i32, i32) {
    %c0_i32 = arith.constant 0 : i32
    %c0_i32_0 = arith.constant 0 : i32
    %c0_i32_1 = arith.constant 0 : i32
    return %c0_i32, %c0_i32_0 : i32, i32
  }
  func.func @transform_3(%arg0: i32, %arg1: i32) -> (i32, i32) {
    %c0_i32 = arith.constant 0 : i32
    %c0_i32_0 = arith.constant 0 : i32
    %c0_i32_1 = arith.constant 0 : i32
    return %c0_i32, %c0_i32_0 : i32, i32
  }
  func.func @transform_4(%arg0: i32, %arg1: i32) -> (i32, i32) {
    %c0_i32 = arith.constant 0 : i32
    %c0_i32_0 = arith.constant 0 : i32
    %c0_i32_1 = arith.constant 0 : i32
    return %c0_i32, %c0_i32_0 : i32, i32
  }
  func.func @transform_5(%arg0: i32, %arg1: i32) -> (i32, i32, i32, i32) {
    %c0_i32 = arith.constant 0 : i32
    %c0_i32_0 = arith.constant 0 : i32
    %c0_i32_1 = arith.constant 0 : i32
    return %arg0, %arg1, %c0_i32, %c0_i32_0 : i32, i32, i32, i32
  }
}

</mosaic_0001>

<llo_original>
// kernel: tpu_custom_call.1
$region0: #{tpu_custom_call.1}
  #allocation0 [shape = 'u32[]', space=smem, size = 0x4, offset = 0x4, fixed_abs, tag = 'smem constant byte address 0x4 - core index']
  #allocation1 [shape = 'u32[144,128]{1,0:T(1,128)}', space=vmem, size = 0x12000, scoped, tag = 'internal scratch']
  #allocation2 [shape = 'f32[18,18,4]{2,1,0:T(8,128)}', space=vmem, size = 0x36000, scoped, tag = 'scratch operand']
  %s0 = inlined_call_operand.vmem [shape: f32[2,16,16,4], index: 0, kind: input, shape index: {}]
  %s1 = inlined_call_operand.vmem [shape: f32[9,4], index: 1, kind: input, shape index: {}]
  %s2 = inlined_call_operand.vmem [shape: f32[1,4], index: 2, kind: input, shape index: {}]
  %s3 = inlined_call_operand.vmem [shape: f32[4,8], index: 3, kind: input, shape index: {}]
  %s4 = inlined_call_operand.vmem [shape: f32[1,8], index: 4, kind: input, shape index: {}]
  %s5 = inlined_call_operand.vmem [shape: f32[2,16,16,8], index: 5, kind: output, shape index: {}]
  %s6 = sld [smem:[#allocation0]]
  $region57: #{tpu_custom_call.1} parent=0
    _
  %s8 = ssub.s32 1, %s6
  %s9 = scalar_select 0, %s8, %s6
  loop: start=0, step=1, limit=6
  $region2: #{tpu_custom_call.1} parent=0 // loop_pre_header
    _
  $region3: #{tpu_custom_call.1} parent=0 // loop_header
    %s11 = sphi 0, %s15
    %p12 = scmp.ge.s32.totalorder %s11, 6
    %s18 = sphi 0, %s30
    %s19 = sphi 0, %s26
    %s20 = sphi 0, %s18
    %s21 = sphi 0, %s19
    %s22 = sphi 0, %s20
    %s23 = sphi 0, %s21
    %s33 = sphi 0, %s35
    %s36 = sphi 0, %s33
    %s37 = sphi 0, %s36
    %s53 = sphi 0, %s37
    %s57 = sphi 0, %s57
    %s59 = sphi 0, %s57
    %s60 = sphi 0, %s59
    %s74 = sphi 0, %s60
    %s78 = sphi 0, %s78
    %s80 = sphi 0, %s78
    %s81 = sphi 0, %s80
    %s95 = sphi 0, %s81
    %s99 = sphi 0, %s99
    %s101 = sphi 0, %s99
    %s102 = sphi 0, %s101
    %s116 = sphi 0, %s102
    %s120 = sphi 0, %s120
    %s122 = sphi 0, %s120
    %s123 = sphi 0, %s122
    %s137 = sphi 0, %s123
    %s145 = sphi 0, %s147
    %s148 = sphi 0, %s145
    %s149 = sphi 0, %s148
    %s165 = sphi 0, %s149
  $region4: #{tpu_custom_call.1} parent=0 // loop_header_branch
    %14 = sbr.rel (%p12) target = $region8
  $region5: #{tpu_custom_call.1} parent=0 // loop_body
    %s16 = ssub.s32 %s11, 1
    %s17 = ssub.s32 %s11, 2
    %s24 = sadd.s32 1, %s19
    %p25 = scmp.ge.s32.totalorder %s24, 2
    %s26 = scalar_select %p25, 0, %s24
    %s27 = sadd.s32 1, %s18
    %s28 = scalar_select %p25, %s27, %s18
    %p29 = scmp.ge.s32.totalorder %s28, 2
    %s30 = scalar_select %p29, 0, %s28
    %s31 = ssub.s32 %s18, %s30
    %p32 = scmp.eq.s32.totalorder %s31, 0
    %s34 = sadd.s32 %s33, 1
    %s35 = scalar_select %p32, %s33, %s34
    %p38 = pneg %p32
    %p39 = scmp.eq.s32.totalorder %s11, 3
    %p40 = por %p38, %p39
    %p41 = scmp.ne.s32.totalorder %s33, %s36
    %p42 = scmp.eq.s32.totalorder %s11, 0
    %p43 = por %p41, %p42
    %p44 = scmp.ne.s32.totalorder %s33, %s36
    %p45 = scmp.eq.s32.totalorder %s16, 3
    %p46 = por %p44, %p45
    %p47 = scmp.ne.s32.totalorder %s36, %s37
    %p48 = scmp.eq.s32.totalorder %s16, 0
    %p49 = por %p47, %p48
    %p50 = scmp.ne.s32.totalorder %s36, %s37
    %p51 = scmp.eq.s32.totalorder %s17, 3
    %p52 = por %p50, %p51
    %p54 = scmp.ne.s32.totalorder %s37, %s53
    %p55 = scmp.eq.s32.totalorder %s17, 0
    %p56 = por %p54, %p55
    %s58 = sadd.s32 %s57, 1
    %p61 = scmp.eq.s32.totalorder %s11, 3
    %p62 = scmp.ne.s32.totalorder %s57, %s59
    %p63 = scmp.eq.s32.totalorder %s11, 0
    %p64 = por %p62, %p63
    %p65 = scmp.ne.s32.totalorder %s57, %s59
    %p66 = scmp.eq.s32.totalorder %s16, 3
    %p67 = por %p65, %p66
    %p68 = scmp.ne.s32.totalorder %s59, %s60
    %p69 = scmp.eq.s32.totalorder %s16, 0
    %p70 = por %p68, %p69
    %p71 = scmp.ne.s32.totalorder %s59, %s60
    %p72 = scmp.eq.s32.totalorder %s17, 3
    %p73 = por %p71, %p72
    %p75 = scmp.ne.s32.totalorder %s60, %s74
    %p76 = scmp.eq.s32.totalorder %s17, 0
    %p77 = por %p75, %p76
    %s79 = sadd.s32 %s78, 1
    %p82 = scmp.eq.s32.totalorder %s11, 3
    %p83 = scmp.ne.s32.totalorder %s78, %s80
    %p84 = scmp.eq.s32.totalorder %s11, 0
    %p85 = por %p83, %p84
    %p86 = scmp.ne.s32.totalorder %s78, %s80
    %p87 = scmp.eq.s32.totalorder %s16, 3
    %p88 = por %p86, %p87
    %p89 = scmp.ne.s32.totalorder %s80, %s81
    %p90 = scmp.eq.s32.totalorder %s16, 0
    %p91 = por %p89, %p90
    %p92 = scmp.ne.s32.totalorder %s80, %s81
    %p93 = scmp.eq.s32.totalorder %s17, 3
    %p94 = por %p92, %p93
    %p96 = scmp.ne.s32.totalorder %s81, %s95
    %p97 = scmp.eq.s32.totalorder %s17, 0
    %p98 = por %p96, %p97
    %s100 = sadd.s32 %s99, 1
    %p103 = scmp.eq.s32.totalorder %s11, 3
    %p104 = scmp.ne.s32.totalorder %s99, %s101
    %p105 = scmp.eq.s32.totalorder %s11, 0
    %p106 = por %p104, %p105
    %p107 = scmp.ne.s32.totalorder %s99, %s101
    %p108 = scmp.eq.s32.totalorder %s16, 3
    %p109 = por %p107, %p108
    %p110 = scmp.ne.s32.totalorder %s101, %s102
    %p111 = scmp.eq.s32.totalorder %s16, 0
    %p112 = por %p110, %p111
    %p113 = scmp.ne.s32.totalorder %s101, %s102
    %p114 = scmp.eq.s32.totalorder %s17, 3
    %p115 = por %p113, %p114
    %p117 = scmp.ne.s32.totalorder %s102, %s116
    %p118 = scmp.eq.s32.totalorder %s17, 0
    %p119 = por %p117, %p118
    %s121 = sadd.s32 %s120, 1
    %p124 = scmp.eq.s32.totalorder %s11, 3
    %p125 = scmp.ne.s32.totalorder %s120, %s122
    %p126 = scmp.eq.s32.totalorder %s11, 0
    %p127 = por %p125, %p126
    %p128 = scmp.ne.s32.totalorder %s120, %s122
    %p129 = scmp.eq.s32.totalorder %s16, 3
    %p130 = por %p128, %p129
    %p131 = scmp.ne.s32.totalorder %s122, %s123
    %p132 = scmp.eq.s32.totalorder %s16, 0
    %p133 = por %p131, %p132
    %p134 = scmp.ne.s32.totalorder %s122, %s123
    %p135 = scmp.eq.s32.totalorder %s17, 3
    %p136 = por %p134, %p135
    %p138 = scmp.ne.s32.totalorder %s123, %s137
    %p139 = scmp.eq.s32.totalorder %s17, 0
    %p140 = por %p138, %p139
    %s141 = ssub.s32 %s18, %s30
    %s142 = ssub.s32 %s19, %s26
    %s143 = sor.u32 %s141, %s142
    %p144 = scmp.eq.s32.totalorder %s143, 0
    %s146 = sadd.s32 %s145, 1
    %s147 = scalar_select %p144, %s145, %s146
    %p150 = pneg %p144
    %p151 = scmp.eq.s32.totalorder %s11, 3
    %p152 = por %p150, %p151
    %p153 = scmp.ne.s32.totalorder %s145, %s148
    %p154 = scmp.eq.s32.totalorder %s11, 0
    %p155 = por %p153, %p154
    %p156 = scmp.ne.s32.totalorder %s145, %s148
    %p157 = scmp.eq.s32.totalorder %s16, 3
    %p158 = por %p156, %p157
    %p159 = scmp.ne.s32.totalorder %s148, %s149
    %p160 = scmp.eq.s32.totalorder %s16, 0
    %p161 = por %p159, %p160
    %p162 = scmp.ne.s32.totalorder %s148, %s149
    %p163 = scmp.eq.s32.totalorder %s17, 3
    %p164 = por %p162, %p163
    %p166 = scmp.ne.s32.totalorder %s149, %s165
    %p167 = scmp.eq.s32.totalorder %s17, 0
    %p168 = por %p166, %p167
    %p169 = scmp.le.s32.totalorder 1, %s11
    %p170 = scmp.lt.s32.totalorder %s11, 5
    %p171 = pnand %p169, %p170
    %p172 = pneg %p171
    // Predicated region
    $region9: #{tpu_custom_call.1} parent=5 // pred_check
      _
    $region10: #{tpu_custom_call.1} parent=5 // pred_check_branch
      %174 = sbr.rel (%p171) target = $region12
    $region11: #{tpu_custom_call.1} parent=5 // pred_region
      %s175 = ssub.s32 %s11, 1
      // Predicated region
      $region13: #{tpu_custom_call.1} parent=11 // pred_check
        %p176 = pneg %p70
      $region14: #{tpu_custom_call.1} parent=11 // pred_check_branch
        %178 = sbr.rel (%p176) target = $region16
      $region15: #{tpu_custom_call.1} parent=11 // pred_region
        _
      $region16: #{tpu_custom_call.1} parent=11 // pred_fallthru
        _
      // Predicated region
      $region17: #{tpu_custom_call.1} parent=11 // pred_check
        %p179 = pneg %p91
      $region18: #{tpu_custom_call.1} parent=11 // pred_check_branch
        %181 = sbr.rel (%p179) target = $region20
      $region19: #{tpu_custom_call.1} parent=11 // pred_region
        _
      $region20: #{tpu_custom_call.1} parent=11 // pred_fallthru
        _
      // Predicated region
      $region21: #{tpu_custom_call.1} parent=11 // pred_check
        %p182 = pneg %p112
      $region22: #{tpu_custom_call.1} parent=11 // pred_check_branch
        %184 = sbr.rel (%p182) target = $region24
      $region23: #{tpu_custom_call.1} parent=11 // pred_region
        _
      $region24: #{tpu_custom_call.1} parent=11 // pred_fallthru
        _
      // Predicated region
      $region25: #{tpu_custom_call.1} parent=11 // pred_check
        %p185 = pneg %p133
      $region26: #{tpu_custom_call.1} parent=11 // pred_check_branch
        %187 = sbr.rel (%p185) target = $region28
      $region27: #{tpu_custom_call.1} parent=11 // pred_region
        _
      $region28: #{tpu_custom_call.1} parent=11 // pred_fallthru
        _
    $region12: #{tpu_custom_call.1} parent=5 // pred_fallthru
      _
    %p188 = scmp.lt.s32.totalorder %s11, 4
    // Predicated region
    $region29: #{tpu_custom_call.1} parent=5 // pred_check
      %p189 = pneg %p188
    $region30: #{tpu_custom_call.1} parent=5 // pred_check_branch
      %191 = sbr.rel (%p189) target = $region32
    $region31: #{tpu_custom_call.1} parent=5 // pred_region
      // Predicated region
      $region33: #{tpu_custom_call.1} parent=31 // pred_check
        %p192 = pneg %p43
      $region34: #{tpu_custom_call.1} parent=31 // pred_check_branch
        %194 = sbr.rel (%p192) target = $region36
      $region35: #{tpu_custom_call.1} parent=31 // pred_region
        %p195 = scmp.lt.s32.totalorder %s18, 1
        %s196 = scalar_select %p195, %s18, 1
        %s197 = smul.addr %s196, 32
        %s198 = smul.addr %s197, 8
        %s199 = scalar_lea.vmem %s0, %s198
      $region36: #{tpu_custom_call.1} parent=31 // pred_fallthru
        _
    $region32: #{tpu_custom_call.1} parent=5 // pred_fallthru
      _
    %p200 = scmp.le.s32.totalorder 1, %s11
    %p201 = scmp.lt.s32.totalorder %s11, 5
    %p202 = pnand %p200, %p201
    %p203 = pneg %p202
    // Predicated region
    $region37: #{tpu_custom_call.1} parent=5 // pred_check
      _
    $region38: #{tpu_custom_call.1} parent=5 // pred_check_branch
      %205 = sbr.rel (%p202) target = $region40
    $region39: #{tpu_custom_call.1} parent=5 // pred_region
      %s206 = ssub.s32 %s11, 1
      %p207 = scmp.lt.s32.totalorder %s20, 1
      %s208 = scalar_select %p207, %s20, 1
      %s209 = smul.addr %s208, 32
      %s210 = smul.addr %s209, 8
      %s211 = scalar_lea.vmem %s0, %s210
      %p212 = pneg %p49
      %p213 = pneg %p46
      %p214 = pneg %p70
      %p215 = pneg %p67
      %p216 = pneg %p91
      %p217 = pneg %p88
      %p218 = pneg %p112
      %p219 = pneg %p109
      %p220 = pneg %p133
      %p221 = pneg %p130
      %p222 = pneg %p161
      %p223 = pneg %p158
      %s224 = smul.u32 8, %s21
      %p225 = scmp.lt.s32.totalorder %s20, 1
      %s226 = scalar_select %p225, %s20, 1
      %p227 = scmp.lt.s32.totalorder %s224, 15
      %s228 = scalar_select %p227, %s224, 15
      %s229 = smul.addr %s228, 2
      %s230 = smul.addr %s226, 32
      %s231 = sadd.s32 %s229, %s230
      %s232 = smul.addr %s231, 8
      %s233 = scalar_lea.vmem %s5, %s232
      %p234 = scmp.lt.s32.totalorder %s20, 1
      %s235 = scalar_select %p234, %s20, 1
      %s236 = smul.addr %s235, 32
      %s237 = smul.addr %s236, 8
      %s238 = scalar_lea.vmem %s0, %s237
      %s239 = smul.u32 8, %s21
      %p240 = scmp.lt.s32.totalorder %s20, 1
      %s241 = scalar_select %p240, %s20, 1
      %p242 = scmp.lt.s32.totalorder %s239, 15
      %s243 = scalar_select %p242, %s239, 15
      %s244 = smul.addr %s243, 2
      %s245 = smul.addr %s241, 32
      %s246 = sadd.s32 %s244, %s245
      %s247 = smul.addr %s246, 8
      %s248 = scalar_lea.vmem %s5, %s247
      %s249 = smul.u32 8, %s21
      %p250 = scmp.eq.s32.totalorder %s21, 0
      // Predicated region
      $region41: #{tpu_custom_call.1} parent=39 // pred_check
        %p251 = pneg %p250
      $region42: #{tpu_custom_call.1} parent=39 // pred_check_branch
        %253 = sbr.rel (%p251) target = $region44
      $region43: #{tpu_custom_call.1} parent=39 // pred_region
        %vm254 = vcmask 31744
        %255 = vst.msk [vmem:[#allocation2] sm:$0xff] %vm254, 0.0
        %256 = vst.msk [vmem:[#allocation2 + $0x8] sm:$0xff] %vm254, 0.0
        %vm257 = vcmask 25600
        %258 = vst.msk [vmem:[#allocation2 + $0x10] sm:$0x3] %vm257, 0.0
        %259 = vst.msk [vmem:[#allocation2 + $0x18] sm:$0xff] %vm254, 0.0
        %260 = vst.msk [vmem:[#allocation2 + $0x20] sm:$0xff] %vm254, 0.0
        %261 = vst.msk [vmem:[#allocation2 + $0x28] sm:$0x3] %vm257, 0.0
        %262 = vst.msk [vmem:[#allocation2 + $0x30] sm:$0xff] %vm254, 0.0
        %263 = vst.msk [vmem:[#allocation2 + $0x38] sm:$0xff] %vm254, 0.0
        %264 = vst.msk [vmem:[#allocation2 + $0x40] sm:$0x3] %vm257, 0.0
        %265 = vst.msk [vmem:[#allocation2 + $0x48] sm:$0xff] %vm254, 0.0
        %266 = vst.msk [vmem:[#allocation2 + $0x50] sm:$0xff] %vm254, 0.0
        %267 = vst.msk [vmem:[#allocation2 + $0x58] sm:$0x3] %vm257, 0.0
        %268 = vst.msk [vmem:[#allocation2 + $0x60] sm:$0xff] %vm254, 0.0
        %269 = vst.msk [vmem:[#allocation2 + $0x68] sm:$0xff] %vm254, 0.0
        %270 = vst.msk [vmem:[#allocation2 + $0x70] sm:$0x3] %vm257, 0.0
        %271 = vst.msk [vmem:[#allocation2 + $0x78] sm:$0xff] %vm254, 0.0
        %272 = vst.msk [vmem:[#allocation2 + $0x80] sm:$0xff] %vm254, 0.0
        %273 = vst.msk [vmem:[#allocation2 + $0x88] sm:$0x3] %vm257, 0.0
        %274 = vst.msk [vmem:[#allocation2 + $0x90] sm:$0xff] %vm254, 0.0
        %275 = vst.msk [vmem:[#allocation2 + $0x98] sm:$0xff] %vm254, 0.0
        %276 = vst.msk [vmem:[#allocation2 + $0xa0] sm:$0x3] %vm257, 0.0
        %277 = vst.msk [vmem:[#allocation2 + $0xa8] sm:$0xff] %vm254, 0.0
        %278 = vst.msk [vmem:[#allocation2 + $0xb0] sm:$0xff] %vm254, 0.0
        %279 = vst.msk [vmem:[#allocation2 + $0xb8] sm:$0x3] %vm257, 0.0
        %280 = vst.msk [vmem:[#allocation2 + $0xc0] sm:$0xff] %vm254, 0.0
        %281 = vst.msk [vmem:[#allocation2 + $0xc8] sm:$0xff] %vm254, 0.0
        %282 = vst.msk [vmem:[#allocation2 + $0xd0] sm:$0x3] %vm257, 0.0
        %283 = vst.msk [vmem:[#allocation2 + $0xd8] sm:$0xff] %vm254, 0.0
        %284 = vst.msk [vmem:[#allocation2 + $0xe0] sm:$0xff] %vm254, 0.0
        %285 = vst.msk [vmem:[#allocation2 + $0xe8] sm:$0x3] %vm257, 0.0
        %286 = vst.msk [vmem:[#allocation2 + $0xf0] sm:$0xff] %vm254, 0.0
        %287 = vst.msk [vmem:[#allocation2 + $0xf8] sm:$0xff] %vm254, 0.0
        %288 = vst.msk [vmem:[#allocation2 + $0x100] sm:$0x3] %vm257, 0.0
        %289 = vst.msk [vmem:[#allocation2 + $0x108] sm:$0xff] %vm254, 0.0
        %290 = vst.msk [vmem:[#allocation2 + $0x110] sm:$0xff] %vm254, 0.0
        %291 = vst.msk [vmem:[#allocation2 + $0x118] sm:$0x3] %vm257, 0.0
        %292 = vst.msk [vmem:[#allocation2 + $0x120] sm:$0xff] %vm254, 0.0
        %293 = vst.msk [vmem:[#allocation2 + $0x128] sm:$0xff] %vm254, 0.0
        %294 = vst.msk [vmem:[#allocation2 + $0x130] sm:$0x3] %vm257, 0.0
        %295 = vst.msk [vmem:[#allocation2 + $0x138] sm:$0xff] %vm254, 0.0
        %296 = vst.msk [vmem:[#allocation2 + $0x140] sm:$0xff] %vm254, 0.0
        %297 = vst.msk [vmem:[#allocation2 + $0x148] sm:$0x3] %vm257, 0.0
        %298 = vst.msk [vmem:[#allocation2 + $0x150] sm:$0xff] %vm254, 0.0
        %299 = vst.msk [vmem:[#allocation2 + $0x158] sm:$0xff] %vm254, 0.0
        %300 = vst.msk [vmem:[#allocation2 + $0x160] sm:$0x3] %vm257, 0.0
        %301 = vst.msk [vmem:[#allocation2 + $0x168] sm:$0xff] %vm254, 0.0
        %302 = vst.msk [vmem:[#allocation2 + $0x170] sm:$0xff] %vm254, 0.0
        %303 = vst.msk [vmem:[#allocation2 + $0x178] sm:$0x3] %vm257, 0.0
        %304 = vst.msk [vmem:[#allocation2 + $0x180] sm:$0xff] %vm254, 0.0
        %305 = vst.msk [vmem:[#allocation2 + $0x188] sm:$0xff] %vm254, 0.0
        %306 = vst.msk [vmem:[#allocation2 + $0x190] sm:$0x3] %vm257, 0.0
        %307 = vst.msk [vmem:[#allocation2 + $0x198] sm:$0xff] %vm254, 0.0
        %308 = vst.msk [vmem:[#allocation2 + $0x1a0] sm:$0xff] %vm254, 0.0
        %309 = vst.msk [vmem:[#allocation2 + $0x1a8] sm:$0x3] %vm257, 0.0
        %v310 = vld [vmem:[%s238] sm:$0xff]
        %v311 = vld [vmem:[%s238 + $0x8] sm:$0xff]
        %v312 = vld [vmem:[%s238 + $0x10] sm:$0xff]
        %v313 = vld [vmem:[%s238 + $0x18] sm:$0xff]
        %v314 = vld [vmem:[%s238 + $0x20] sm:$0xff]
        %v315 = vld [vmem:[%s238 + $0x28] sm:$0xff]
        %v316 = vld [vmem:[%s238 + $0x30] sm:$0xff]
        %v317 = vld [vmem:[%s238 + $0x38] sm:$0xff]
        %v318 = vld [vmem:[%s238 + $0x40] sm:$0xff]
        %v319 = vld [vmem:[%s238 + $0x48] sm:$0xff]
        %v320 = vld [vmem:[%s238 + $0x50] sm:$0xff]
        %v321 = vld [vmem:[%s238 + $0x58] sm:$0xff]
        %v322 = vld [vmem:[%s238 + $0x60] sm:$0xff]
        %v323 = vld [vmem:[%s238 + $0x68] sm:$0xff]
        %v324 = vld [vmem:[%s238 + $0x70] sm:$0xff]
        %v325 = vld [vmem:[%s238 + $0x78] sm:$0xff]
        %v326 = vld [vmem:[%s238 + $0x80] sm:$0xff]
        %v327 = vld [vmem:[%s238 + $0x88] sm:$0xff]
        %v328 = vld [vmem:[%s238 + $0x90] sm:$0xff]
        %v329 = vld [vmem:[%s238 + $0x98] sm:$0xff]
        %v330 = vld [vmem:[%s238 + $0xa0] sm:$0xff]
        %v331 = vld [vmem:[%s238 + $0xa8] sm:$0xff]
        %v332 = vld [vmem:[%s238 + $0xb0] sm:$0xff]
        %v333 = vld [vmem:[%s238 + $0xb8] sm:$0xff]
        %v334 = vld [vmem:[%s238 + $0xc0] sm:$0xff]
        %v335 = vld [vmem:[%s238 + $0xc8] sm:$0xff]
        %v336 = vld [vmem:[%s238 + $0xd0] sm:$0xff]
        %v337 = vld [vmem:[%s238 + $0xd8] sm:$0xff]
        %v338 = vld [vmem:[%s238 + $0xe0] sm:$0xff]
        %v339 = vld [vmem:[%s238 + $0xe8] sm:$0xff]
        %v340 = vld [vmem:[%s238 + $0xf0] sm:$0xff]
        %v341 = vld [vmem:[%s238 + $0xf8] sm:$0xff]
        %s342 = scalar_lea.vmem [#allocation2], 24
        %343 = vst.msk [vmem:[%s342 + $0x1] sm:$0xff] %vm254, %v310
        %344 = vst.msk [vmem:[%s342 + $0x9] sm:$0xff] %vm254, %v311
        %345 = vst.msk [vmem:[%s342 + $0x19] sm:$0xff] %vm254, %v312
        %346 = vst.msk [vmem:[%s342 + $0x21] sm:$0xff] %vm254, %v313
        %347 = vst.msk [vmem:[%s342 + $0x31] sm:$0xff] %vm254, %v314
        %348 = vst.msk [vmem:[%s342 + $0x39] sm:$0xff] %vm254, %v315
        %349 = vst.msk [vmem:[%s342 + $0x49] sm:$0xff] %vm254, %v316
        %350 = vst.msk [vmem:[%s342 + $0x51] sm:$0xff] %vm254, %v317
        %351 = vst.msk [vmem:[%s342 + $0x61] sm:$0xff] %vm254, %v318
        %352 = vst.msk [vmem:[%s342 + $0x69] sm:$0xff] %vm254, %v319
        %353 = vst.msk [vmem:[%s342 + $0x79] sm:$0xff] %vm254, %v320
        %354 = vst.msk [vmem:[%s342 + $0x81] sm:$0xff] %vm254, %v321
        %355 = vst.msk [vmem:[%s342 + $0x91] sm:$0xff] %vm254, %v322
        %356 = vst.msk [vmem:[%s342 + $0x99] sm:$0xff] %vm254, %v323
        %357 = vst.msk [vmem:[%s342 + $0xa9] sm:$0xff] %vm254, %v324
        %358 = vst.msk [vmem:[%s342 + $0xb1] sm:$0xff] %vm254, %v325
        %359 = vst.msk [vmem:[%s342 + $0xc1] sm:$0xff] %vm254, %v326
        %360 = vst.msk [vmem:[%s342 + $0xc9] sm:$0xff] %vm254, %v327
        %361 = vst.msk [vmem:[%s342 + $0xd9] sm:$0xff] %vm254, %v328
        %362 = vst.msk [vmem:[%s342 + $0xe1] sm:$0xff] %vm254, %v329
        %363 = vst.msk [vmem:[%s342 + $0xf1] sm:$0xff] %vm254, %v330
        %364 = vst.msk [vmem:[%s342 + $0xf9] sm:$0xff] %vm254, %v331
        %365 = vst.msk [vmem:[%s342 + $0x109] sm:$0xff] %vm254, %v332
        %366 = vst.msk [vmem:[%s342 + $0x111] sm:$0xff] %vm254, %v333
        %367 = vst.msk [vmem:[%s342 + $0x121] sm:$0xff] %vm254, %v334
        %368 = vst.msk [vmem:[%s342 + $0x129] sm:$0xff] %vm254, %v335
        %369 = vst.msk [vmem:[%s342 + $0x139] sm:$0xff] %vm254, %v336
        %370 = vst.msk [vmem:[%s342 + $0x141] sm:$0xff] %vm254, %v337
        %371 = vst.msk [vmem:[%s342 + $0x151] sm:$0xff] %vm254, %v338
        %372 = vst.msk [vmem:[%s342 + $0x159] sm:$0xff] %vm254, %v339
        %373 = vst.msk [vmem:[%s342 + $0x169] sm:$0xff] %vm254, %v340
        %374 = vst.msk [vmem:[%s342 + $0x171] sm:$0xff] %vm254, %v341
      $region44: #{tpu_custom_call.1} parent=39 // pred_fallthru
        _
      %s375 = smul.u32 %s21, 8
      %v376 = vld [vmem:[%s1] sm:$0xff]
      %v377 = vld [vmem:[%s1 + $0x8] sm:$0x1]
      %s378 = smul.u32 %s375, 24
      %s379 = scalar_lea.vmem [#allocation2], %s378
      %v380 = vld [vmem:[%s379] sm:$0xff]
      %v381 = vld [vmem:[%s379 + $0x8] sm:$0xff]
      %v382 = vld [vmem:[%s379 + $0x18] sm:$0xff]
      %v383 = vld [vmem:[%s379 + $0x20] sm:$0xff]
      %v384 = vld [vmem:[%s379 + $0x30] sm:$0xff]
      %v385 = vld [vmem:[%s379 + $0x38] sm:$0xff]
      %v386 = vld [vmem:[%s379 + $0x48] sm:$0xff]
      %v387 = vld [vmem:[%s379 + $0x50] sm:$0xff]
      %v388 = vld [vmem:[%s379 + $0x60] sm:$0xff]
      %v389 = vld [vmem:[%s379 + $0x68] sm:$0xff]
      %v390 = vld [vmem:[%s379 + $0x78] sm:$0xff]
      %v391 = vld [vmem:[%s379 + $0x80] sm:$0xff]
      %v392 = vld [vmem:[%s379 + $0x90] sm:$0xff]
      %v393 = vld [vmem:[%s379 + $0x98] sm:$0xff]
      %v394 = vld [vmem:[%s379 + $0xa8] sm:$0xff]
      %v395 = vld [vmem:[%s379 + $0xb0] sm:$0xff]
      %v396 = vlaneseq
      %v397 = vshrl.u32 %v396, 7
      %v398 = vsub.s32 0, %v397
      %v399 = vrot.slane %v376, %v398
      %v400 = vmul.f32 %v380, %v399
      %v401 = vmul.f32 %v381, %v399
      %v402 = vmul.f32 %v382, %v399
      %v403 = vmul.f32 %v383, %v399
      %v404 = vmul.f32 %v384, %v399
      %v405 = vmul.f32 %v385, %v399
      %v406 = vmul.f32 %v386, %v399
      %v407 = vmul.f32 %v387, %v399
      %v408 = vmul.f32 %v388, %v399
      %v409 = vmul.f32 %v389, %v399
      %v410 = vmul.f32 %v390, %v399
      %v411 = vmul.f32 %v391, %v399
      %v412 = vmul.f32 %v392, %v399
      %v413 = vmul.f32 %v393, %v399
      %v414 = vmul.f32 %v394, %v399
      %v415 = vmul.f32 %v395, %v399
      %v416 = vadd.f32 %v400, 0.0
      %v417 = vadd.f32 %v401, 0.0
      %v418 = vadd.f32 %v402, 0.0
      %v419 = vadd.f32 %v403, 0.0
      %v420 = vadd.f32 %v404, 0.0
      %v421 = vadd.f32 %v405, 0.0
      %v422 = vadd.f32 %v406, 0.0
      %v423 = vadd.f32 %v407, 0.0
      %v424 = vadd.f32 %v408, 0.0
      %v425 = vadd.f32 %v409, 0.0
      %v426 = vadd.f32 %v410, 0.0
      %v427 = vadd.f32 %v411, 0.0
      %v428 = vadd.f32 %v412, 0.0
      %v429 = vadd.f32 %v413, 0.0
      %v430 = vadd.f32 %v414, 0.0
      %v431 = vadd.f32 %v415, 0.0
      %v432 = vld [vmem:[%s379 + $0x1] sm:$0xff]
      %v433 = vld [vmem:[%s379 + $0x9] sm:$0xff]
      %v434 = vld [vmem:[%s379 + $0x19] sm:$0xff]
      %v435 = vld [vmem:[%s379 + $0x21] sm:$0xff]
      %v436 = vld [vmem:[%s379 + $0x31] sm:$0xff]
      %v437 = vld [vmem:[%s379 + $0x39] sm:$0xff]
      %v438 = vld [vmem:[%s379 + $0x49] sm:$0xff]
      %v439 = vld [vmem:[%s379 + $0x51] sm:$0xff]
      %v440 = vld [vmem:[%s379 + $0x61] sm:$0xff]
      %v441 = vld [vmem:[%s379 + $0x69] sm:$0xff]
      %v442 = vld [vmem:[%s379 + $0x79] sm:$0xff]
      %v443 = vld [vmem:[%s379 + $0x81] sm:$0xff]
      %v444 = vld [vmem:[%s379 + $0x91] sm:$0xff]
      %v445 = vld [vmem:[%s379 + $0x99] sm:$0xff]
      %v446 = vld [vmem:[%s379 + $0xa9] sm:$0xff]
      %v447 = vld [vmem:[%s379 + $0xb1] sm:$0xff]
      %v448 = vlaneseq
      %v449 = vshrl.u32 %v448, 7
      %v450 = vsub.s32 1, %v449
      %v451 = vrot.slane %v376, %v450
      %v452 = vmul.f32 %v432, %v451
      %v453 = vmul.f32 %v433, %v451
      %v454 = vmul.f32 %v434, %v451
      %v455 = vmul.f32 %v435, %v451
      %v456 = vmul.f32 %v436, %v451
      %v457 = vmul.f32 %v437, %v451
      %v458 = vmul.f32 %v438, %v451
      %v459 = vmul.f32 %v439, %v451
      %v460 = vmul.f32 %v440, %v451
      %v461 = vmul.f32 %v441, %v451
      %v462 = vmul.f32 %v442, %v451
      %v463 = vmul.f32 %v443, %v451
      %v464 = vmul.f32 %v444, %v451
      %v465 = vmul.f32 %v445, %v451
      %v466 = vmul.f32 %v446, %v451
      %v467 = vmul.f32 %v447, %v451
      %v468 = vadd.f32 %v416, %v452
      %v469 = vadd.f32 %v417, %v453
      %v470 = vadd.f32 %v418, %v454
      %v471 = vadd.f32 %v419, %v455
      %v472 = vadd.f32 %v420, %v456
      %v473 = vadd.f32 %v421, %v457
      %v474 = vadd.f32 %v422, %v458
      %v475 = vadd.f32 %v423, %v459
      %v476 = vadd.f32 %v424, %v460
      %v477 = vadd.f32 %v425, %v461
      %v478 = vadd.f32 %v426, %v462
      %v479 = vadd.f32 %v427, %v463
      %v480 = vadd.f32 %v428, %v464
      %v481 = vadd.f32 %v429, %v465
      %v482 = vadd.f32 %v430, %v466
      %v483 = vadd.f32 %v431, %v467
      %v484 = vld [vmem:[%s379 + $0x2] sm:$0xff]
      %v485 = vld [vmem:[%s379 + $0xa] sm:$0xff]
      %v486 = vld [vmem:[%s379 + $0x1a] sm:$0xff]
      %v487 = vld [vmem:[%s379 + $0x22] sm:$0xff]
      %v488 = vld [vmem:[%s379 + $0x32] sm:$0xff]
      %v489 = vld [vmem:[%s379 + $0x3a] sm:$0xff]
      %v490 = vld [vmem:[%s379 + $0x4a] sm:$0xff]
      %v491 = vld [vmem:[%s379 + $0x52] sm:$0xff]
      %v492 = vld [vmem:[%s379 + $0x62] sm:$0xff]
      %v493 = vld [vmem:[%s379 + $0x6a] sm:$0xff]
      %v494 = vld [vmem:[%s379 + $0x7a] sm:$0xff]
      %v495 = vld [vmem:[%s379 + $0x82] sm:$0xff]
      %v496 = vld [vmem:[%s379 + $0x92] sm:$0xff]
      %v497 = vld [vmem:[%s379 + $0x9a] sm:$0xff]
      %v498 = vld [vmem:[%s379 + $0xaa] sm:$0xff]
      %v499 = vld [vmem:[%s379 + $0xb2] sm:$0xff]
      %v500 = vlaneseq
      %v501 = vshrl.u32 %v500, 7
      %v502 = vsub.s32 2, %v501
      %v503 = vrot.slane %v376, %v502
      %v504 = vmul.f32 %v484, %v503
      %v505 = vmul.f32 %v485, %v503
      %v506 = vmul.f32 %v486, %v503
      %v507 = vmul.f32 %v487, %v503
      %v508 = vmul.f32 %v488, %v503
      %v509 = vmul.f32 %v489, %v503
      %v510 = vmul.f32 %v490, %v503
      %v511 = vmul.f32 %v491, %v503
      %v512 = vmul.f32 %v492, %v503
      %v513 = vmul.f32 %v493, %v503
      %v514 = vmul.f32 %v494, %v503
      %v515 = vmul.f32 %v495, %v503
      %v516 = vmul.f32 %v496, %v503
      %v517 = vmul.f32 %v497, %v503
      %v518 = vmul.f32 %v498, %v503
      %v519 = vmul.f32 %v499, %v503
      %v520 = vadd.f32 %v468, %v504
      %v521 = vadd.f32 %v469, %v505
      %v522 = vadd.f32 %v470, %v506
      %v523 = vadd.f32 %v471, %v507
      %v524 = vadd.f32 %v472, %v508
      %v525 = vadd.f32 %v473, %v509
      %v526 = vadd.f32 %v474, %v510
      %v527 = vadd.f32 %v475, %v511
      %v528 = vadd.f32 %v476, %v512
      %v529 = vadd.f32 %v477, %v513
      %v530 = vadd.f32 %v478, %v514
      %v531 = vadd.f32 %v479, %v515
      %v532 = vadd.f32 %v480, %v516
      %v533 = vadd.f32 %v481, %v517
      %v534 = vadd.f32 %v482, %v518
      %v535 = vadd.f32 %v483, %v519
      %s536 = sadd.s32 %s375, 1
      %s537 = smul.u32 %s536, 24
      %s538 = scalar_lea.vmem [#allocation2], %s537
      %v539 = vld [vmem:[%s538] sm:$0xff]
      %v540 = vld [vmem:[%s538 + $0x8] sm:$0xff]
      %v541 = vld [vmem:[%s538 + $0x18] sm:$0xff]
      %v542 = vld [vmem:[%s538 + $0x20] sm:$0xff]
      %v543 = vld [vmem:[%s538 + $0x30] sm:$0xff]
      %v544 = vld [vmem:[%s538 + $0x38] sm:$0xff]
      %v545 = vld [vmem:[%s538 + $0x48] sm:$0xff]
      %v546 = vld [vmem:[%s538 + $0x50] sm:$0xff]
      %v547 = vld [vmem:[%s538 + $0x60] sm:$0xff]
      %v548 = vld [vmem:[%s538 + $0x68] sm:$0xff]
      %v549 = vld [vmem:[%s538 + $0x78] sm:$0xff]
      %v550 = vld [vmem:[%s538 + $0x80] sm:$0xff]
      %v551 = vld [vmem:[%s538 + $0x90] sm:$0xff]
      %v552 = vld [vmem:[%s538 + $0x98] sm:$0xff]
      %v553 = vld [vmem:[%s538 + $0xa8] sm:$0xff]
      %v554 = vld [vmem:[%s538 + $0xb0] sm:$0xff]
      %v555 = vlaneseq
      %v556 = vshrl.u32 %v555, 7
      %v557 = vsub.s32 3, %v556
      %v558 = vrot.slane %v376, %v557
      %v559 = vmul.f32 %v539, %v558
      %v560 = vmul.f32 %v540, %v558
      %v561 = vmul.f32 %v541, %v558
      %v562 = vmul.f32 %v542, %v558
      %v563 = vmul.f32 %v543, %v558
      %v564 = vmul.f32 %v544, %v558
      %v565 = vmul.f32 %v545, %v558
      %v566 = vmul.f32 %v546, %v558
      %v567 = vmul.f32 %v547, %v558
      %v568 = vmul.f32 %v548, %v558
      %v569 = vmul.f32 %v549, %v558
      %v570 = vmul.f32 %v550, %v558
      %v571 = vmul.f32 %v551, %v558
      %v572 = vmul.f32 %v552, %v558
      %v573 = vmul.f32 %v553, %v558
      %v574 = vmul.f32 %v554, %v558
      %v575 = vadd.f32 %v520, %v559
      %v576 = vadd.f32 %v521, %v560
      %v577 = vadd.f32 %v522, %v561
      %v578 = vadd.f32 %v523, %v562
      %v579 = vadd.f32 %v524, %v563
      %v580 = vadd.f32 %v525, %v564
      %v581 = vadd.f32 %v526, %v565
      %v582 = vadd.f32 %v527, %v566
      %v583 = vadd.f32 %v528, %v567
      %v584 = vadd.f32 %v529, %v568
      %v585 = vadd.f32 %v530, %v569
      %v586 = vadd.f32 %v531, %v570
      %v587 = vadd.f32 %v532, %v571
      %v588 = vadd.f32 %v533, %v572
      %v589 = vadd.f32 %v534, %v573
      %v590 = vadd.f32 %v535, %v574
      %v591 = vld [vmem:[%s538 + $0x1] sm:$0xff]
      %v592 = vld [vmem:[%s538 + $0x9] sm:$0xff]
      %v593 = vld [vmem:[%s538 + $0x19] sm:$0xff]
      %v594 = vld [vmem:[%s538 + $0x21] sm:$0xff]
      %v595 = vld [vmem:[%s538 + $0x31] sm:$0xff]
      %v596 = vld [vmem:[%s538 + $0x39] sm:$0xff]
      %v597 = vld [vmem:[%s538 + $0x49] sm:$0xff]
      %v598 = vld [vmem:[%s538 + $0x51] sm:$0xff]
      %v599 = vld [vmem:[%s538 + $0x61] sm:$0xff]
      %v600 = vld [vmem:[%s538 + $0x69] sm:$0xff]
      %v601 = vld [vmem:[%s538 + $0x79] sm:$0xff]
      %v602 = vld [vmem:[%s538 + $0x81] sm:$0xff]
      %v603 = vld [vmem:[%s538 + $0x91] sm:$0xff]
      %v604 = vld [vmem:[%s538 + $0x99] sm:$0xff]
      %v605 = vld [vmem:[%s538 + $0xa9] sm:$0xff]
      %v606 = vld [vmem:[%s538 + $0xb1] sm:$0xff]
      %v607 = vlaneseq
      %v608 = vshrl.u32 %v607, 7
      %v609 = vsub.s32 4, %v608
      %v610 = vrot.slane %v376, %v609
      %v611 = vmul.f32 %v591, %v610
      %v612 = vmul.f32 %v592, %v610
      %v613 = vmul.f32 %v593, %v610
      %v614 = vmul.f32 %v594, %v610
      %v615 = vmul.f32 %v595, %v610
      %v616 = vmul.f32 %v596, %v610
      %v617 = vmul.f32 %v597, %v610
      %v618 = vmul.f32 %v598, %v610
      %v619 = vmul.f32 %v599, %v610
      %v620 = vmul.f32 %v600, %v610
      %v621 = vmul.f32 %v601, %v610
      %v622 = vmul.f32 %v602, %v610
      %v623 = vmul.f32 %v603, %v610
      %v624 = vmul.f32 %v604, %v610
      %v625 = vmul.f32 %v605, %v610
      %v626 = vmul.f32 %v606, %v610
      %v627 = vadd.f32 %v575, %v611
      %v628 = vadd.f32 %v576, %v612
      %v629 = vadd.f32 %v577, %v613
      %v630 = vadd.f32 %v578, %v614
      %v631 = vadd.f32 %v579, %v615
      %v632 = vadd.f32 %v580, %v616
      %v633 = vadd.f32 %v581, %v617
      %v634 = vadd.f32 %v582, %v618
      %v635 = vadd.f32 %v583, %v619
      %v636 = vadd.f32 %v584, %v620
      %v637 = vadd.f32 %v585, %v621
      %v638 = vadd.f32 %v586, %v622
      %v639 = vadd.f32 %v587, %v623
      %v640 = vadd.f32 %v588, %v624
      %v641 = vadd.f32 %v589, %v625
      %v642 = vadd.f32 %v590, %v626
      %v643 = vld [vmem:[%s538 + $0x2] sm:$0xff]
      %v644 = vld [vmem:[%s538 + $0xa] sm:$0xff]
      %v645 = vld [vmem:[%s538 + $0x1a] sm:$0xff]
      %v646 = vld [vmem:[%s538 + $0x22] sm:$0xff]
      %v647 = vld [vmem:[%s538 + $0x32] sm:$0xff]
      %v648 = vld [vmem:[%s538 + $0x3a] sm:$0xff]
      %v649 = vld [vmem:[%s538 + $0x4a] sm:$0xff]
      %v650 = vld [vmem:[%s538 + $0x52] sm:$0xff]
      %v651 = vld [vmem:[%s538 + $0x62] sm:$0xff]
      %v652 = vld [vmem:[%s538 + $0x6a] sm:$0xff]
      %v653 = vld [vmem:[%s538 + $0x7a] sm:$0xff]
      %v654 = vld [vmem:[%s538 + $0x82] sm:$0xff]
      %v655 = vld [vmem:[%s538 + $0x92] sm:$0xff]
      %v656 = vld [vmem:[%s538 + $0x9a] sm:$0xff]
      %v657 = vld [vmem:[%s538 + $0xaa] sm:$0xff]
      %v658 = vld [vmem:[%s538 + $0xb2] sm:$0xff]
      %v659 = vlaneseq
      %v660 = vshrl.u32 %v659, 7
      %v661 = vsub.s32 5, %v660
      %v662 = vrot.slane %v376, %v661
      %v663 = vmul.f32 %v643, %v662
      %v664 = vmul.f32 %v644, %v662
      %v665 = vmul.f32 %v645, %v662
      %v666 = vmul.f32 %v646, %v662
      %v667 = vmul.f32 %v647, %v662
      %v668 = vmul.f32 %v648, %v662
      %v669 = vmul.f32 %v649, %v662
      %v670 = vmul.f32 %v650, %v662
      %v671 = vmul.f32 %v651, %v662
      %v672 = vmul.f32 %v652, %v662
      %v673 = vmul.f32 %v653, %v662
      %v674 = vmul.f32 %v654, %v662
      %v675 = vmul.f32 %v655, %v662
      %v676 = vmul.f32 %v656, %v662
      %v677 = vmul.f32 %v657, %v662
      %v678 = vmul.f32 %v658, %v662
      %v679 = vadd.f32 %v627, %v663
      %v680 = vadd.f32 %v628, %v664
      %v681 = vadd.f32 %v629, %v665
      %v682 = vadd.f32 %v630, %v666
      %v683 = vadd.f32 %v631, %v667
      %v684 = vadd.f32 %v632, %v668
      %v685 = vadd.f32 %v633, %v669
      %v686 = vadd.f32 %v634, %v670
      %v687 = vadd.f32 %v635, %v671
      %v688 = vadd.f32 %v636, %v672
      %v689 = vadd.f32 %v637, %v673
      %v690 = vadd.f32 %v638, %v674
      %v691 = vadd.f32 %v639, %v675
      %v692 = vadd.f32 %v640, %v676
      %v693 = vadd.f32 %v641, %v677
      %v694 = vadd.f32 %v642, %v678
      %s695 = sadd.s32 %s375, 2
      %s696 = smul.u32 %s695, 24
      %s697 = scalar_lea.vmem [#allocation2], %s696
      %v698 = vld [vmem:[%s697] sm:$0xff]
      %v699 = vld [vmem:[%s697 + $0x8] sm:$0xff]
      %v700 = vld [vmem:[%s697 + $0x18] sm:$0xff]
      %v701 = vld [vmem:[%s697 + $0x20] sm:$0xff]
      %v702 = vld [vmem:[%s697 + $0x30] sm:$0xff]
      %v703 = vld [vmem:[%s697 + $0x38] sm:$0xff]
      %v704 = vld [vmem:[%s697 + $0x48] sm:$0xff]
      %v705 = vld [vmem:[%s697 + $0x50] sm:$0xff]
      %v706 = vld [vmem:[%s697 + $0x60] sm:$0xff]
      %v707 = vld [vmem:[%s697 + $0x68] sm:$0xff]
      %v708 = vld [vmem:[%s697 + $0x78] sm:$0xff]
      %v709 = vld [vmem:[%s697 + $0x80] sm:$0xff]
      %v710 = vld [vmem:[%s697 + $0x90] sm:$0xff]
      %v711 = vld [vmem:[%s697 + $0x98] sm:$0xff]
      %v712 = vld [vmem:[%s697 + $0xa8] sm:$0xff]
      %v713 = vld [vmem:[%s697 + $0xb0] sm:$0xff]
      %v714 = vlaneseq
      %v715 = vshrl.u32 %v714, 7
      %v716 = vsub.s32 6, %v715
      %v717 = vrot.slane %v376, %v716
      %v718 = vmul.f32 %v698, %v717
      %v719 = vmul.f32 %v699, %v717
      %v720 = vmul.f32 %v700, %v717
      %v721 = vmul.f32 %v701, %v717
      %v722 = vmul.f32 %v702, %v717
      %v723 = vmul.f32 %v703, %v717
      %v724 = vmul.f32 %v704, %v717
      %v725 = vmul.f32 %v705, %v717
      %v726 = vmul.f32 %v706, %v717
      %v727 = vmul.f32 %v707, %v717
      %v728 = vmul.f32 %v708, %v717
      %v729 = vmul.f32 %v709, %v717
      %v730 = vmul.f32 %v710, %v717
      %v731 = vmul.f32 %v711, %v717
      %v732 = vmul.f32 %v712, %v717
      %v733 = vmul.f32 %v713, %v717
      %v734 = vadd.f32 %v679, %v718
      %v735 = vadd.f32 %v680, %v719
      %v736 = vadd.f32 %v681, %v720
      %v737 = vadd.f32 %v682, %v721
      %v738 = vadd.f32 %v683, %v722
      %v739 = vadd.f32 %v684, %v723
      %v740 = vadd.f32 %v685, %v724
      %v741 = vadd.f32 %v686, %v725
      %v742 = vadd.f32 %v687, %v726
      %v743 = vadd.f32 %v688, %v727
      %v744 = vadd.f32 %v689, %v728
      %v745 = vadd.f32 %v690, %v729
      %v746 = vadd.f32 %v691, %v730
      %v747 = vadd.f32 %v692, %v731
      %v748 = vadd.f32 %v693, %v732
      %v749 = vadd.f32 %v694, %v733
      %v750 = vld [vmem:[%s697 + $0x1] sm:$0xff]
      %v751 = vld [vmem:[%s697 + $0x9] sm:$0xff]
      %v752 = vld [vmem:[%s697 + $0x19] sm:$0xff]
      %v753 = vld [vmem:[%s697 + $0x21] sm:$0xff]
      %v754 = vld [vmem:[%s697 + $0x31] sm:$0xff]
      %v755 = vld [vmem:[%s697 + $0x39] sm:$0xff]
      %v756 = vld [vmem:[%s697 + $0x49] sm:$0xff]
      %v757 = vld [vmem:[%s697 + $0x51] sm:$0xff]
      %v758 = vld [vmem:[%s697 + $0x61] sm:$0xff]
      %v759 = vld [vmem:[%s697 + $0x69] sm:$0xff]
      %v760 = vld [vmem:[%s697 + $0x79] sm:$0xff]
      %v761 = vld [vmem:[%s697 + $0x81] sm:$0xff]
      %v762 = vld [vmem:[%s697 + $0x91] sm:$0xff]
      %v763 = vld [vmem:[%s697 + $0x99] sm:$0xff]
      %v764 = vld [vmem:[%s697 + $0xa9] sm:$0xff]
      %v765 = vld [vmem:[%s697 + $0xb1] sm:$0xff]
      %v766 = vlaneseq
      %v767 = vshrl.u32 %v766, 7
      %v768 = vsub.s32 7, %v767
      %v769 = vrot.slane %v376, %v768
      %v770 = vmul.f32 %v750, %v769
      %v771 = vmul.f32 %v751, %v769
      %v772 = vmul.f32 %v752, %v769
      %v773 = vmul.f32 %v753, %v769
      %v774 = vmul.f32 %v754, %v769
      %v775 = vmul.f32 %v755, %v769
      %v776 = vmul.f32 %v756, %v769
      %v777 = vmul.f32 %v757, %v769
      %v778 = vmul.f32 %v758, %v769
      %v779 = vmul.f32 %v759, %v769
      %v780 = vmul.f32 %v760, %v769
      %v781 = vmul.f32 %v761, %v769
      %v782 = vmul.f32 %v762, %v769
      %v783 = vmul.f32 %v763, %v769
      %v784 = vmul.f32 %v764, %v769
      %v785 = vmul.f32 %v765, %v769
      %v786 = vadd.f32 %v734, %v770
      %v787 = vadd.f32 %v735, %v771
      %v788 = vadd.f32 %v736, %v772
      %v789 = vadd.f32 %v737, %v773
      %v790 = vadd.f32 %v738, %v774
      %v791 = vadd.f32 %v739, %v775
      %v792 = vadd.f32 %v740, %v776
      %v793 = vadd.f32 %v741, %v777
      %v794 = vadd.f32 %v742, %v778
      %v795 = vadd.f32 %v743, %v779
      %v796 = vadd.f32 %v744, %v780
      %v797 = vadd.f32 %v745, %v781
      %v798 = vadd.f32 %v746, %v782
      %v799 = vadd.f32 %v747, %v783
      %v800 = vadd.f32 %v748, %v784
      %v801 = vadd.f32 %v749, %v785
      %v802 = vld [vmem:[%s697 + $0x2] sm:$0xff]
      %v803 = vld [vmem:[%s697 + $0xa] sm:$0xff]
      %v804 = vld [vmem:[%s697 + $0x1a] sm:$0xff]
      %v805 = vld [vmem:[%s697 + $0x22] sm:$0xff]
      %v806 = vld [vmem:[%s697 + $0x32] sm:$0xff]
      %v807 = vld [vmem:[%s697 + $0x3a] sm:$0xff]
      %v808 = vld [vmem:[%s697 + $0x4a] sm:$0xff]
      %v809 = vld [vmem:[%s697 + $0x52] sm:$0xff]
      %v810 = vld [vmem:[%s697 + $0x62] sm:$0xff]
      %v811 = vld [vmem:[%s697 + $0x6a] sm:$0xff]
      %v812 = vld [vmem:[%s697 + $0x7a] sm:$0xff]
      %v813 = vld [vmem:[%s697 + $0x82] sm:$0xff]
      %v814 = vld [vmem:[%s697 + $0x92] sm:$0xff]
      %v815 = vld [vmem:[%s697 + $0x9a] sm:$0xff]
      %v816 = vld [vmem:[%s697 + $0xaa] sm:$0xff]
      %v817 = vld [vmem:[%s697 + $0xb2] sm:$0xff]
      %v818 = vlaneseq
      %v819 = vshrl.u32 %v818, 7
      %v820 = vsub.s32 0, %v819
      %v821 = vrot.slane %v377, %v820
      %v822 = vmul.f32 %v802, %v821
      %v823 = vmul.f32 %v803, %v821
      %v824 = vmul.f32 %v804, %v821
      %v825 = vmul.f32 %v805, %v821
      %v826 = vmul.f32 %v806, %v821
      %v827 = vmul.f32 %v807, %v821
      %v828 = vmul.f32 %v808, %v821
      %v829 = vmul.f32 %v809, %v821
      %v830 = vmul.f32 %v810, %v821
      %v831 = vmul.f32 %v811, %v821
      %v832 = vmul.f32 %v812, %v821
      %v833 = vmul.f32 %v813, %v821
      %v834 = vmul.f32 %v814, %v821
      %v835 = vmul.f32 %v815, %v821
      %v836 = vmul.f32 %v816, %v821
      %v837 = vmul.f32 %v817, %v821
      %v838 = vadd.f32 %v786, %v822
      %v839 = vadd.f32 %v787, %v823
      %v840 = vadd.f32 %v788, %v824
      %v841 = vadd.f32 %v789, %v825
      %v842 = vadd.f32 %v790, %v826
      %v843 = vadd.f32 %v791, %v827
      %v844 = vadd.f32 %v792, %v828
      %v845 = vadd.f32 %v793, %v829
      %v846 = vadd.f32 %v794, %v830
      %v847 = vadd.f32 %v795, %v831
      %v848 = vadd.f32 %v796, %v832
      %v849 = vadd.f32 %v797, %v833
      %v850 = vadd.f32 %v798, %v834
      %v851 = vadd.f32 %v799, %v835
      %v852 = vadd.f32 %v800, %v836
      %v853 = vadd.f32 %v801, %v837
      %v854 = vld [vmem:[%s2] sm:$0x1]
      %v856 = vlaneseq
      %v857 = vshrl.u32 %v856, 7
      %v858 = vsub.s32 0, %v857
      %v859 = vrot.slane %v854, %v858
      %v861 = vadd.f32 %v838, %v859
      %v862 = vadd.f32 %v839, %v859
      %v863 = vadd.f32 %v840, %v859
      %v864 = vadd.f32 %v841, %v859
      %v865 = vadd.f32 %v842, %v859
      %v866 = vadd.f32 %v843, %v859
      %v867 = vadd.f32 %v844, %v859
      %v868 = vadd.f32 %v845, %v859
      %v869 = vadd.f32 %v846, %v859
      %v870 = vadd.f32 %v847, %v859
      %v871 = vadd.f32 %v848, %v859
      %v872 = vadd.f32 %v849, %v859
      %v873 = vadd.f32 %v850, %v859
      %v874 = vadd.f32 %v851, %v859
      %v875 = vadd.f32 %v852, %v859
      %v876 = vadd.f32 %v853, %v859
      %v877 = vld [vmem:[%s3] sm:$0xf]
      %v878 = vld [vmem:[%s4] sm:$0x1]
      %v880 = vlaneseq
      %v881 = vshrl.u32 %v880, 7
      %v882 = vsub.s32 0, %v881
      %v883 = vrot.slane %v878, %v882
      %vm885 = vcmask 31744
      %v887 = vsel %vm885, %v861, 0
      %v890 = vsel %vm885, %v862, 0
      %v893 = vsel %vm885, %v863, 0
      %v896 = vsel %vm885, %v864, 0
      %v899 = vsel %vm885, %v865, 0
      %v902 = vsel %vm885, %v866, 0
      %v905 = vsel %vm885, %v867, 0
      %v908 = vsel %vm885, %v868, 0
      %v911 = vsel %vm885, %v869, 0
      %v914 = vsel %vm885, %v870, 0
      %v917 = vsel %vm885, %v871, 0
      %v920 = vsel %vm885, %v872, 0
      %v923 = vsel %vm885, %v873, 0
      %v926 = vsel %vm885, %v874, 0
      %v929 = vsel %vm885, %v875, 0
      %v932 = vsel %vm885, %v876, 0
      %vm934 = vcmask 1043456
      %v936 = vsel %vm934, %v877, 0
      %938 = vmatprep.subr.mxu0 0.0
      %939 = vmatpush1.msra.mxu0 %v936
      %940 = vmatprep.subr.mxu0 0.0
      %941 = vmatpush1.msra.mxu0 0.0
      %942 = vmatprep.subr.mxu0 0.0
      %943 = vmatpush1.msra.mxu0 0.0
      %944 = vmatprep.subr.mxu0 0.0
      %945 = vmatpush1.msra.mxu0 0.0
      %946 = vmatprep.subr.mxu0 0.0
      %947 = vmatpush1.msra.mxu0 0.0
      %948 = vmatprep.subr.mxu0 0.0
      %949 = vmatpush1.msra.mxu0 0.0
      %950 = vmatprep.subr.mxu0 0.0
      %951 = vmatpush1.msra.mxu0 0.0
      %952 = vmatprep.subr.mxu0 0.0
      %953 = vmatpush1.msra.mxu0 0.0
      %954 = vmatprep.subr.mxu0 0.0
      %955 = vmatpush1.msra.mxu0 0.0
      %956 = vmatprep.subr.mxu0 0.0
      %957 = vmatpush1.msra.mxu0 0.0
      %958 = vmatprep.subr.mxu0 0.0
      %959 = vmatpush1.msra.mxu0 0.0
      %960 = vmatprep.subr.mxu0 0.0
      %961 = vmatpush1.msra.mxu0 0.0
      %962 = vmatprep.subr.mxu0 0.0
      %963 = vmatpush1.msra.mxu0 0.0
      %964 = vmatprep.subr.mxu0 0.0
      %965 = vmatpush1.msra.mxu0 0.0
      %966 = vmatprep.subr.mxu0 0.0
      %967 = vmatpush1.msra.mxu0 0.0
      %968 = vmatprep.subr.mxu0 0.0
      %969 = vmatpush1.msra.mxu0 0.0
      %970 = vmatprep.subr.mxu0 0.0
      %971 = vmatpush1.msra.mxu0 0.0
      %972 = vmatprep.subr.mxu0 0.0
      %973 = vmatpush1.msra.mxu0 0.0
      %974 = vmatprep.subr.mxu0 0.0
      %975 = vmatpush1.msra.mxu0 0.0
      %976 = vmatprep.subr.mxu0 0.0
      %977 = vmatpush1.msra.mxu0 0.0
      %978 = vmatprep.subr.mxu0 0.0
      %979 = vmatpush1.msra.mxu0 0.0
      %980 = vmatprep.subr.mxu0 0.0
      %981 = vmatpush1.msra.mxu0 0.0
      %982 = vmatprep.subr.mxu0 0.0
      %983 = vmatpush1.msra.mxu0 0.0
      %984 = vmatprep.subr.mxu0 0.0
      %985 = vmatpush1.msra.mxu0 0.0
      %986 = vmatprep.subr.mxu0 0.0
      %987 = vmatpush1.msra.mxu0 0.0
      %988 = vmatprep.subr.mxu0 0.0
      %989 = vmatpush1.msra.mxu0 0.0
      %990 = vmatprep.subr.mxu0 0.0
      %991 = vmatpush1.msra.mxu0 0.0
      %992 = vmatprep.subr.mxu0 0.0
      %993 = vmatpush1.msra.mxu0 0.0
      %994 = vmatprep.subr.mxu0 0.0
      %995 = vmatpush1.msra.mxu0 0.0
      %996 = vmatprep.subr.mxu0 0.0
      %997 = vmatpush1.msra.mxu0 0.0
      %998 = vmatprep.subr.mxu0 0.0
      %999 = vmatpush1.msra.mxu0 0.0
      %1000 = vmatprep.subr.mxu0 0.0
      %1001 = vmatpush1.msra.mxu0 0.0
      %1002 = vmatprep.mubr.f32.mxu0 0.0
      %1003 = vmatmul.mubr.f32.gmra.mrb[0].mxu0 %v887
      %v1004 = vpop.f32.mrb[0].mxu0
      %v1005 = vadd.f32 %v883, %v1004
      %v1006 = vpop.f32.mrb[0].mxu0
      %1007 = vmatprep.mubr.f32.mxu0 0.0
      %1008 = vmatmul.mubr.f32.gmra.mrb[0].mxu0 %v890
      %v1009 = vpop.f32.mrb[0].mxu0
      %v1010 = vadd.f32 %v883, %v1009
      %v1011 = vpop.f32.mrb[0].mxu0
      %1012 = vmatprep.mubr.f32.mxu0 0.0
      %1013 = vmatmul.mubr.f32.gmra.mrb[0].mxu0 %v893
      %v1014 = vpop.f32.mrb[0].mxu0
      %v1015 = vadd.f32 %v883, %v1014
      %v1016 = vpop.f32.mrb[0].mxu0
      %1017 = vmatprep.mubr.f32.mxu0 0.0
      %1018 = vmatmul.mubr.f32.gmra.mrb[0].mxu0 %v896
      %v1019 = vpop.f32.mrb[0].mxu0
      %v1020 = vadd.f32 %v883, %v1019
      %v1021 = vpop.f32.mrb[0].mxu0
      %1022 = vmatprep.mubr.f32.mxu0 0.0
      %1023 = vmatmul.mubr.f32.gmra.mrb[0].mxu0 %v899
      %v1024 = vpop.f32.mrb[0].mxu0
      %v1025 = vadd.f32 %v883, %v1024
      %v1026 = vpop.f32.mrb[0].mxu0
      %1027 = vmatprep.mubr.f32.mxu0 0.0
      %1028 = vmatmul.mubr.f32.gmra.mrb[0].mxu0 %v902
      %v1029 = vpop.f32.mrb[0].mxu0
      %v1030 = vadd.f32 %v883, %v1029
      %v1031 = vpop.f32.mrb[0].mxu0
      %1032 = vmatprep.mubr.f32.mxu0 0.0
      %1033 = vmatmul.mubr.f32.gmra.mrb[0].mxu0 %v905
      %v1034 = vpop.f32.mrb[0].mxu0
      %v1035 = vadd.f32 %v883, %v1034
      %v1036 = vpop.f32.mrb[0].mxu0
      %1037 = vmatprep.mubr.f32.mxu0 0.0
      %1038 = vmatmul.mubr.f32.gmra.mrb[0].mxu0 %v908
      %v1039 = vpop.f32.mrb[0].mxu0
      %v1040 = vadd.f32 %v883, %v1039
      %v1041 = vpop.f32.mrb[0].mxu0
      %1042 = vmatprep.mubr.f32.mxu0 0.0
      %1043 = vmatmul.mubr.f32.gmra.mrb[0].mxu0 %v911
      %v1044 = vpop.f32.mrb[0].mxu0
      %v1045 = vadd.f32 %v883, %v1044
      %v1046 = vpop.f32.mrb[0].mxu0
      %1047 = vmatprep.mubr.f32.mxu0 0.0
      %1048 = vmatmul.mubr.f32.gmra.mrb[0].mxu0 %v914
      %v1049 = vpop.f32.mrb[0].mxu0
      %v1050 = vadd.f32 %v883, %v1049
      %v1051 = vpop.f32.mrb[0].mxu0
      %1052 = vmatprep.mubr.f32.mxu0 0.0
      %1053 = vmatmul.mubr.f32.gmra.mrb[0].mxu0 %v917
      %v1054 = vpop.f32.mrb[0].mxu0
      %v1055 = vadd.f32 %v883, %v1054
      %v1056 = vpop.f32.mrb[0].mxu0
      %1057 = vmatprep.mubr.f32.mxu0 0.0
      %1058 = vmatmul.mubr.f32.gmra.mrb[0].mxu0 %v920
      %v1059 = vpop.f32.mrb[0].mxu0
      %v1060 = vadd.f32 %v883, %v1059
      %v1061 = vpop.f32.mrb[0].mxu0
      %1062 = vmatprep.mubr.f32.mxu0 0.0
      %1063 = vmatmul.mubr.f32.gmra.mrb[0].mxu0 %v923
      %v1064 = vpop.f32.mrb[0].mxu0
      %v1065 = vadd.f32 %v883, %v1064
      %v1066 = vpop.f32.mrb[0].mxu0
      %1067 = vmatprep.mubr.f32.mxu0 0.0
      %1068 = vmatmul.mubr.f32.gmra.mrb[0].mxu0 %v926
      %v1069 = vpop.f32.mrb[0].mxu0
      %v1070 = vadd.f32 %v883, %v1069
      %v1071 = vpop.f32.mrb[0].mxu0
      %1072 = vmatprep.mubr.f32.mxu0 0.0
      %1073 = vmatmul.mubr.f32.gmra.mrb[0].mxu0 %v929
      %v1074 = vpop.f32.mrb[0].mxu0
      %v1075 = vadd.f32 %v883, %v1074
      %v1076 = vpop.f32.mrb[0].mxu0
      %1077 = vmatprep.mubr.f32.mxu0 0.0
      %1078 = vmatmul.mubr.f32.gmra.mrb[0].mxu0 %v932
      %v1079 = vpop.f32.mrb[0].mxu0
      %v1080 = vadd.f32 %v883, %v1079
      %v1081 = vpop.f32.mrb[0].mxu0
      %1082 = vdwg.mxu0
      %vm1083 = vcmask 64512
      %1084 = vst.msk [vmem:[%s248] sm:$0xff] %vm1083, %v1005
      %1085 = vst.msk [vmem:[%s248 + $0x8] sm:$0xff] %vm1083, %v1010
      %1086 = vst.msk [vmem:[%s248 + $0x10] sm:$0xff] %vm1083, %v1015
      %1087 = vst.msk [vmem:[%s248 + $0x18] sm:$0xff] %vm1083, %v1020
      %1088 = vst.msk [vmem:[%s248 + $0x20] sm:$0xff] %vm1083, %v1025
      %1089 = vst.msk [vmem:[%s248 + $0x28] sm:$0xff] %vm1083, %v1030
      %1090 = vst.msk [vmem:[%s248 + $0x30] sm:$0xff] %vm1083, %v1035
      %1091 = vst.msk [vmem:[%s248 + $0x38] sm:$0xff] %vm1083, %v1040
      %1092 = vst.msk [vmem:[%s248 + $0x40] sm:$0xff] %vm1083, %v1045
      %1093 = vst.msk [vmem:[%s248 + $0x48] sm:$0xff] %vm1083, %v1050
      %1094 = vst.msk [vmem:[%s248 + $0x50] sm:$0xff] %vm1083, %v1055
      %1095 = vst.msk [vmem:[%s248 + $0x58] sm:$0xff] %vm1083, %v1060
      %1096 = vst.msk [vmem:[%s248 + $0x60] sm:$0xff] %vm1083, %v1065
      %1097 = vst.msk [vmem:[%s248 + $0x68] sm:$0xff] %vm1083, %v1070
      %1098 = vst.msk [vmem:[%s248 + $0x70] sm:$0xff] %vm1083, %v1075
      %1099 = vst.msk [vmem:[%s248 + $0x78] sm:$0xff] %vm1083, %v1080
      %s1100 = smul.u32 8, %s21
      %p1101 = scmp.lt.s32.totalorder %s20, 1
      %s1102 = scalar_select %p1101, %s20, 1
      %p1103 = scmp.lt.s32.totalorder %s1100, 15
      %s1104 = scalar_select %p1103, %s1100, 15
      %s1105 = smul.addr %s1104, 2
      %s1106 = smul.addr %s1102, 32
      %s1107 = sadd.s32 %s1105, %s1106
      %s1108 = smul.addr %s1107, 8
      %s1109 = scalar_lea.vmem %s5, %s1108
      // Predicated region
      $region45: #{tpu_custom_call.1} parent=39 // pred_check
        %p1110 = pneg %p158
      $region46: #{tpu_custom_call.1} parent=39 // pred_check_branch
        %1112 = sbr.rel (%p1110) target = $region48
      $region47: #{tpu_custom_call.1} parent=39 // pred_region
        %s1113 = smul.u32 8, %s21
      $region48: #{tpu_custom_call.1} parent=39 // pred_fallthru
        _
    $region40: #{tpu_custom_call.1} parent=5 // pred_fallthru
      _
    %p1114 = scmp.le.s32.totalorder 2, %s11
    // Predicated region
    $region49: #{tpu_custom_call.1} parent=5 // pred_check
      %p1115 = pneg %p1114
    $region50: #{tpu_custom_call.1} parent=5 // pred_check_branch
      %1117 = sbr.rel (%p1115) target = $region52
    $region51: #{tpu_custom_call.1} parent=5 // pred_region
      %s1118 = ssub.s32 %s11, 2
      // Predicated region
      $region53: #{tpu_custom_call.1} parent=51 // pred_check
        %p1119 = pneg %p164
      $region54: #{tpu_custom_call.1} parent=51 // pred_check_branch
        %1121 = sbr.rel (%p1119) target = $region56
      $region55: #{tpu_custom_call.1} parent=51 // pred_region
        %s1122 = smul.u32 8, %s23
        %p1123 = scmp.lt.s32.totalorder %s22, 1
        %s1124 = scalar_select %p1123, %s22, 1
        %p1125 = scmp.lt.s32.totalorder %s1122, 15
        %s1126 = scalar_select %p1125, %s1122, 15
        %s1127 = smul.addr %s1126, 2
        %s1128 = smul.addr %s1124, 32
        %s1129 = sadd.s32 %s1127, %s1128
        %s1130 = smul.addr %s1129, 8
        %s1131 = scalar_lea.vmem %s5, %s1130
      $region56: #{tpu_custom_call.1} parent=51 // pred_fallthru
        _
    $region52: #{tpu_custom_call.1} parent=5 // pred_fallthru
      _
  $region6: #{tpu_custom_call.1} parent=0 // loop_footer
    %s15 = sadd.s32 1, %s11
  $region7: #{tpu_custom_call.1} parent=0 // loop_footer_branch
    %10 = sbr.rel target = $region3
  $region8: #{tpu_custom_call.1} parent=0 // loop_exit
    _

</llo_original>
